<compile_context>
chip_gen: v7x
topology: tpu7x:2x2x1
jax: 0.10.0
libtpu: 0.0.40
codegen_flags: <defaults>
</compile_context>

<pallas_src>
import math

import jax
import jax.numpy as jnp
from jax.experimental import pallas as pl
from jax.experimental.pallas import tpu as pltpu


_VMEM_LIMIT_BYTES = 48 * 1024 * 1024  # sized for v7x (64 MiB physical) w/ headroom


# ----------------------------------------------------------------------------
# Small helpers
# ----------------------------------------------------------------------------
def _gelu_tanh(x):
    # tanh-approximate GELU (bias-gelu fusion formula used by Megatron), fp32.
    return 0.5 * x * (1.0 + jnp.tanh(0.7978845608028654 * (x + 0.044715 * x * x * x)))


def _round_up(v, m):
    return ((v + m - 1) // m) * m


def _pick_tile(dim, preferred):
    # Blocks must be (8,128)-aligned in the last two dims or cover the full dim.
    return preferred if dim % preferred == 0 else dim


def _padded_capacity(num_tokens, num_experts, capacity_factor, min_capacity):
    cap = max(min_capacity, math.ceil(num_tokens / num_experts * capacity_factor))
    # Sublane-friendly padding; production should prefer 128/256 (lane-dense).
    return _round_up(cap, 8)


# ----------------------------------------------------------------------------
# Kernel 1: dispatch  --  xe[e] = sum_{S tiles} dmask[e, :, sT] @ x[sT]
# grid = (E, S_tiles); E parallel (megacore), S arbitrary (reduction).
# Weights not involved; x tile is resident across... dmask streams per (e, s).
# ----------------------------------------------------------------------------
def _dispatch_kernel(counts_ref, dmask_ref, x_ref, xe_ref, acc_ref):
    e = pl.program_id(0)
    s = pl.program_id(1)
    count = counts_ref[e]

    @pl.when(s == 0)
    def _():
        acc_ref[...] = jnp.zeros_like(acc_ref)

    @pl.when(count > 0)  # skip experts with no routed tokens
    def _():
        acc_ref[...] += jnp.dot(dmask_ref[0], x_ref[...],
                                preferred_element_type=jnp.float32)  # (C, M)

    @pl.when(s == pl.num_programs(1) - 1)
    def _():
        xe_ref[0] = acc_ref[...].astype(xe_ref.dtype)


def moe_dispatch(counts, dispatch_ecs, x_bf16, *, tile_s):
    E, C, S = dispatch_ecs.shape
    M = x_bf16.shape[-1]
    ns = S // tile_s
    return pl.pallas_call(
        _dispatch_kernel,
        out_shape=jax.ShapeDtypeStruct((E, C, M), jnp.bfloat16),
        grid_spec=pltpu.PrefetchScalarGridSpec(
            num_scalar_prefetch=1,
            grid=(E, ns),
            in_specs=[
                pl.BlockSpec((1, C, tile_s), lambda e, s, cnt: (e, 0, s)),  # dmask
                pl.BlockSpec((tile_s, M), lambda e, s, cnt: (s, 0)),        # x
            ],
            out_specs=pl.BlockSpec((1, C, M), lambda e, s, cnt: (e, 0, 0)),
            scratch_shapes=[pltpu.VMEM((C, M), jnp.float32)],
        ),
        compiler_params=pltpu.CompilerParams(
            dimension_semantics=("parallel", "arbitrary"),
            vmem_limit_bytes=_VMEM_LIMIT_BYTES),
    )(counts, dispatch_ecs, x_bf16)


# ----------------------------------------------------------------------------
# Kernel 2: expert MLP  --  ye[e] = gelu(xe[e] @ w1[e] + b1[e]) @ w2[e] + b2[e]
# grid = (E, F_tiles); per-expert xe/b2 stay resident across the F loop,
# w1/w2 F-tiles stream.  E parallel, F arbitrary (reduction into acc).
# ----------------------------------------------------------------------------
def _expert_mlp_kernel(counts_ref, xe_ref, w1_ref, b1_ref, w2_ref, b2_ref,
                       ye_ref, acc_ref):
    e = pl.program_id(0)
    f = pl.program_id(1)
    count = counts_ref[e]

    @pl.when(f == 0)
    def _():
        acc_ref[...] = jnp.zeros_like(acc_ref)

    @pl.when(count > 0)  # skip the full C*M*F matmuls for empty experts
    def _():
        h = jnp.dot(xe_ref[0], w1_ref[0],
                    preferred_element_type=jnp.float32) + b1_ref[0]      # (C, tF) f32
        h = _gelu_tanh(h)                                                # fp32 math
        acc_ref[...] += jnp.dot(h.astype(jnp.bfloat16), w2_ref[0],
                                preferred_element_type=jnp.float32)      # (C, M)

    @pl.when(f == pl.num_programs(1) - 1)
    def _():
        ye_ref[0] = (acc_ref[...] + b2_ref[0]).astype(ye_ref.dtype)


def moe_expert_mlp(counts, xe, w1, b1, w2, b2, *, tile_f):
    E, C, M = xe.shape
    F = w1.shape[-1]
    nf = F // tile_f
    return pl.pallas_call(
        _expert_mlp_kernel,
        out_shape=jax.ShapeDtypeStruct((E, C, M), jnp.bfloat16),
        grid_spec=pltpu.PrefetchScalarGridSpec(
            num_scalar_prefetch=1,
            grid=(E, nf),
            in_specs=[
                pl.BlockSpec((1, C, M), lambda e, f, cnt: (e, 0, 0)),       # xe
                pl.BlockSpec((1, M, tile_f), lambda e, f, cnt: (e, 0, f)),  # w1
                pl.BlockSpec((1, 1, tile_f), lambda e, f, cnt: (e, 0, f)),  # b1
                pl.BlockSpec((1, tile_f, M), lambda e, f, cnt: (e, f, 0)),  # w2
                pl.BlockSpec((1, 1, M), lambda e, f, cnt: (e, 0, 0)),       # b2
            ],
            out_specs=pl.BlockSpec((1, C, M), lambda e, f, cnt: (e, 0, 0)),
            scratch_shapes=[pltpu.VMEM((C, M), jnp.float32)],
        ),
        compiler_params=pltpu.CompilerParams(
            dimension_semantics=("parallel", "arbitrary"),
            vmem_limit_bytes=_VMEM_LIMIT_BYTES),
    )(counts, xe, w1, b1, w2, b2)


# ----------------------------------------------------------------------------
# Kernel 3: combine  --  out[sT] = sum_e cw[e, sT, :] @ ye[e]
# grid = (S_tiles, E); S parallel (megacore), E arbitrary (reduction into acc).
# ----------------------------------------------------------------------------
def _combine_kernel(counts_ref, cw_ref, ye_ref, out_ref, acc_ref):
    s = pl.program_id(0)
    e = pl.program_id(1)
    count = counts_ref[e]

    @pl.when(e == 0)
    def _():
        acc_ref[...] = jnp.zeros_like(acc_ref)

    @pl.when(count > 0)  # empty experts contribute nothing
    def _():
        acc_ref[...] += jnp.dot(cw_ref[0], ye_ref[0],
                                preferred_element_type=jnp.float32)  # (tS, M)

    @pl.when(e == pl.num_programs(1) - 1)
    def _():
        out_ref[...] = acc_ref[...].astype(out_ref.dtype)


def moe_combine(counts, combine_esc, ye, *, tile_s):
    E, S, C = combine_esc.shape
    M = ye.shape[-1]
    ns = S // tile_s
    return pl.pallas_call(
        _combine_kernel,
        out_shape=jax.ShapeDtypeStruct((S, M), jnp.float32),
        grid_spec=pltpu.PrefetchScalarGridSpec(
            num_scalar_prefetch=1,
            grid=(ns, E),
            in_specs=[
                pl.BlockSpec((1, tile_s, C), lambda s, e, cnt: (e, s, 0)),  # combine
                pl.BlockSpec((1, C, M), lambda s, e, cnt: (e, 0, 0)),       # ye
            ],
            out_specs=pl.BlockSpec((tile_s, M), lambda s, e, cnt: (s, 0)),
            scratch_shapes=[pltpu.VMEM((tile_s, M), jnp.float32)],
        ),
        compiler_params=pltpu.CompilerParams(
            dimension_semantics=("parallel", "arbitrary"),
            vmem_limit_bytes=_VMEM_LIMIT_BYTES),
    )(counts, combine_esc, ye)


# ----------------------------------------------------------------------------
# Router (top-1 gating, DeepSpeed top1gating semantics) -- plain JAX glue
# ----------------------------------------------------------------------------
def top1_gating(logits, capacity, num_experts):
    gates = jax.nn.softmax(logits, axis=-1)                        # (S, E)
    indices1 = jnp.argmax(gates, axis=-1)                          # (S,)
    mask1 = jax.nn.one_hot(indices1, num_experts, dtype=jnp.float32)

    # load-balancing aux loss (computed before capacity dropping)
    me = jnp.mean(gates, axis=0)
    ce = jnp.mean(mask1, axis=0)
    l_aux = jnp.sum(me * ce) * num_experts

    # TODO(synk): Random Token Selection (use_rts=True) / noisy_gate_policy need
    # RNG-based re-ranking; capacity is assigned deterministically (FCFS) here.
    locations1 = jnp.cumsum(mask1, axis=0) - 1.0                   # (S, E)
    mask1 = mask1 * (locations1 < capacity).astype(jnp.float32)    # drop overflow
    locations1_s = jnp.sum(locations1 * mask1, axis=1).astype(jnp.int32)

    gates1_s = jnp.sum(gates * mask1, axis=1)                      # (S,)
    locs_oh = jax.nn.one_hot(locations1_s, capacity, dtype=jnp.float32)  # (S, C)

    combine = (gates1_s[:, None, None]
               * mask1[:, :, None]
               * locs_oh[:, None, :])                              # (S, E, C)
    dispatch = (combine > 0.0).astype(jnp.float32)                 # (S, E, C)
    counts = jnp.sum(mask1, axis=0).astype(jnp.int32)              # tokens/expert
    return l_aux, combine, dispatch, counts


# ----------------------------------------------------------------------------
# Full MoE forward (Router + MOELayer), matching MoE.forward semantics
# ----------------------------------------------------------------------------
def moe_forward(hidden_states, params, num_experts, capacity_factor=1.0,
                min_capacity=4, tile_s=128, tile_f=128):
    seq, batch, hidden = hidden_states.shape
    x2d = hidden_states.reshape(-1, hidden).astype(jnp.float32)    # (S, M)
    S, M = x2d.shape
    F = params["w1"].shape[-1]

    capacity = _padded_capacity(S, num_experts, capacity_factor, min_capacity)

    logits = x2d @ params["wg"]                                    # (S, E) router
    l_aux, combine, dispatch, counts = top1_gating(logits, capacity, num_experts)

    # Kernel operand layouts + bf16 casts (fp32 accumulation inside the kernels).
    dispatch_ecs = jnp.transpose(dispatch, (1, 2, 0)).astype(jnp.bfloat16)  # (E,C,S)
    combine_esc = jnp.transpose(combine, (1, 0, 2)).astype(jnp.bfloat16)    # (E,S,C)
    x_bf16 = x2d.astype(jnp.bfloat16)

    ts = _pick_tile(S, tile_s)
    tf = _pick_tile(F, tile_f)

    xe = moe_dispatch(counts, dispatch_ecs, x_bf16, tile_s=ts)              # (E,C,M)
    ye = moe_expert_mlp(counts, xe,
                        params["w1"].astype(jnp.bfloat16),
                        params["b1"].astype(jnp.float32),
                        params["w2"].astype(jnp.bfloat16),
                        params["b2"].astype(jnp.float32),
                        tile_f=tf)                                          # (E,C,M)
    out2d = moe_combine(counts, combine_esc, ye, tile_s=ts)                 # (S,M)

    output = out2d.reshape(seq, batch, hidden).astype(hidden_states.dtype)
    mlp_bias = jnp.array(0.0, dtype=hidden_states.dtype)
    # TODO(synk): use_residual / expert_tensor_parallelism paths not implemented
    # (module defaults are off); l_aux is stashed on the module in Megatron.
    del l_aux
    return output, mlp_bias


# ----------------------------------------------------------------------------
# Pure-JAX reference mirroring the kernel's bf16 rounding points
# ----------------------------------------------------------------------------
def _reference_expert_path(x2d, dispatch, combine, params):
    bf, f32 = jnp.bfloat16, jnp.float32
    x = x2d.astype(bf).astype(f32)
    d = dispatch.astype(bf).astype(f32)
    c = combine.astype(bf).astype(f32)
    w1 = params["w1"].astype(bf).astype(f32)
    w2 = params["w2"].astype(bf).astype(f32)

    xe = jnp.einsum("sec,sm->ecm", d, x).astype(bf).astype(f32)         # (E, C, M)
    h = _gelu_tanh(jnp.einsum("ecm,emf->ecf", xe, w1) + params["b1"])
    h = h.astype(bf).astype(f32)
    y = jnp.einsum("ecf,efm->ecm", h, w2) + params["b2"]
    y = y.astype(bf).astype(f32)
    return jnp.einsum("sec,ecm->sm", c, y)                              # (S, M)


if __name__ == "__main__":
    # Small shapes: hidden=64, ffn=4*hidden=256, experts=4, seq=128, batch=2
    # (S=256 tokens -> 2 token tiles of 128; F=256 -> 2 FFN tiles of 128, so the
    # tiled pipeline paths are actually exercised).
    hidden = 64
    ffn = 4 * hidden
    num_experts = 4
    seq, batch = 128, 2

    key = jax.random.PRNGKey(0)
    k_x, k_wg, k_w1, k_b1, k_w2, k_b2 = jax.random.split(key, 6)

    hidden_states = jax.random.normal(k_x, (seq, batch, hidden), jnp.float32)

    params = {
        "wg": jax.random.normal(k_wg, (hidden, num_experts), jnp.float32) * 0.1,
        "w1": jax.random.normal(k_w1, (num_experts, hidden, ffn), jnp.float32) * 0.05,
        "b1": jax.random.normal(k_b1, (num_experts, 1, ffn), jnp.float32) * 0.01,
        "w2": jax.random.normal(k_w2, (num_experts, ffn, hidden), jnp.float32) * 0.05,
        "b2": jax.random.normal(k_b2, (num_experts, 1, hidden), jnp.float32) * 0.01,
    }

    output, mlp_bias = moe_forward(hidden_states, params, num_experts)
    output = jax.block_until_ready(output)
    mlp_bias = jax.block_until_ready(mlp_bias)

    # Sanity-check the Pallas expert path against the einsum reference.
    S = seq * batch
    x2d = hidden_states.reshape(-1, hidden)
    capacity = _padded_capacity(S, num_experts, 1.0, 4)
    logits = x2d @ params["wg"]
    _, combine, dispatch, _ = top1_gating(logits, capacity, num_experts)
    ref = _reference_expert_path(x2d, dispatch, combine, params)
    got = output.reshape(-1, hidden)
    assert jnp.allclose(got, ref, rtol=1e-2, atol=1e-2), "mismatch vs reference"
    assert output.shape == hidden_states.shape
    assert mlp_bias.shape == ()

    print("KERNEL_OK")
</pallas_src>

<mosaic_0001>
module attributes {stable_mosaic.version = 11 : i64} {
  func.func @_dispatch_kernel(%arg0: i32, %arg1: i32, %arg2: memref<4xi32, #tpu.memory_space<smem>>, %arg3: memref<1x64x128xbf16, #tpu.memory_space<vmem>>, %arg4: memref<128x64xbf16, #tpu.memory_space<vmem>>, %arg5: memref<1x64x64xbf16, #tpu.memory_space<vmem>>, %arg6: memref<64x64xf32, #tpu.memory_space<vmem>>) attributes {dimension_semantics = [#tpu.dimension_semantics<parallel>, #tpu.dimension_semantics<arbitrary>], iteration_bounds = array<i64: 4, 2>, scalar_prefetch = 1 : i64, scratch_operands = 1 : i64, tpu.core_type = #tpu.core_type<tc>, window_params = [{transform_indices = @transform_0, window_bounds = array<i64: 1, 64, 128>}, {transform_indices = @transform_1, window_bounds = array<i64: 128, 64>}, {transform_indices = @transform_2, window_bounds = array<i64: 1, 64, 64>}]} {
    %0 = arith.index_cast %arg0 : i32 to index
    %1 = memref.load %arg2[%0] : memref<4xi32, #tpu.memory_space<smem>>
    %c0_i32 = arith.constant 0 : i32
    %2 = arith.cmpi eq, %arg1, %c0_i32 : i32
    %3 = arith.extui %2 : i1 to i32
    %c0_i32_0 = arith.constant 0 : i32
    %4 = arith.cmpi ne, %3, %c0_i32_0 : i32
    scf.if %4 {
      %cst = arith.constant 0.000000e+00 : f32
      %11 = vector.broadcast %cst : f32 to vector<64x64xf32>
      %c0 = arith.constant 0 : index
      %c0_4 = arith.constant 0 : index
      %12 = vector.load %arg6[%c0, %c0_4] : memref<64x64xf32, #tpu.memory_space<vmem>>, vector<64x64xf32>
      tpu.vector_store %arg6[%c0, %c0_4], %11 {strides = array<i32>} : memref<64x64xf32, #tpu.memory_space<vmem>>, vector<64x64xf32>,
    } else {
    }
    %c0_i32_1 = arith.constant 0 : i32
    %5 = arith.cmpi sgt, %1, %c0_i32_1 : i32
    %6 = arith.extui %5 : i1 to i32
    %c0_i32_2 = arith.constant 0 : i32
    %7 = arith.cmpi ne, %6, %c0_i32_2 : i32
    scf.if %7 {
      %c0 = arith.constant 0 : index
      %c0_4 = arith.constant 0 : index
      %11 = vector.load %arg6[%c0, %c0_4] : memref<64x64xf32, #tpu.memory_space<vmem>>, vector<64x64xf32>
      %c0_5 = arith.constant 0 : index
      %c0_6 = arith.constant 0 : index
      %c0_7 = arith.constant 0 : index
      %12 = vector.load %arg3[%c0_5, %c0_6, %c0_7] : memref<1x64x128xbf16, #tpu.memory_space<vmem>>, vector<1x64x128xbf16>
      %13 = vector.shape_cast %12 : vector<1x64x128xbf16> to vector<64x128xbf16>
      %c0_8 = arith.constant 0 : index
      %c0_9 = arith.constant 0 : index
      %14 = vector.load %arg4[%c0_8, %c0_9] : memref<128x64xbf16, #tpu.memory_space<vmem>>, vector<128x64xbf16>
      %cst = arith.constant dense<0.000000e+00> : vector<64x64xf32>
      %15 = tpu.matmul %13, %14, %cst {dimension_numbers = #tpu.dot_dimension_numbers<[1], [0], [0], [1], [0, 0, 1, 1], [], []>} : vector<64x128xbf16>, vector<128x64xbf16>, vector<64x64xf32> -> vector<64x64xf32>
      %16 = arith.addf %11, %15 : vector<64x64xf32>
      %c0_10 = arith.constant 0 : index
      %c0_11 = arith.constant 0 : index
      %17 = vector.load %arg6[%c0_10, %c0_11] : memref<64x64xf32, #tpu.memory_space<vmem>>, vector<64x64xf32>
      tpu.vector_store %arg6[%c0_10, %c0_11], %16 {strides = array<i32>} : memref<64x64xf32, #tpu.memory_space<vmem>>, vector<64x64xf32>,
    } else {
    }
    %c1_i32 = arith.constant 1 : i32
    %8 = arith.cmpi eq, %arg1, %c1_i32 : i32
    %9 = arith.extui %8 : i1 to i32
    %c0_i32_3 = arith.constant 0 : i32
    %10 = arith.cmpi ne, %9, %c0_i32_3 : i32
    scf.if %10 {
      %c0 = arith.constant 0 : index
      %c0_4 = arith.constant 0 : index
      %11 = vector.load %arg6[%c0, %c0_4] : memref<64x64xf32, #tpu.memory_space<vmem>>, vector<64x64xf32>
      %12 = arith.truncf %11 : vector<64x64xf32> to vector<64x64xbf16>
      %c0_5 = arith.constant 0 : index
      %c0_6 = arith.constant 0 : index
      %c0_7 = arith.constant 0 : index
      %13 = vector.load %arg5[%c0_5, %c0_6, %c0_7] : memref<1x64x64xbf16, #tpu.memory_space<vmem>>, vector<1x64x64xbf16>
      %14 = vector.shape_cast %13 : vector<1x64x64xbf16> to vector<64x64xbf16>
      %15 = vector.shape_cast %12 : vector<64x64xbf16> to vector<1x64x64xbf16>
      tpu.vector_store %arg5[%c0_5, %c0_6, %c0_7], %15 {strides = array<i32>} : memref<1x64x64xbf16, #tpu.memory_space<vmem>>, vector<1x64x64xbf16>,
    } else {
    }
    return
  }
  func.func @transform_0(%arg0: i32, %arg1: i32, %arg2: memref<4xi32, #tpu.memory_space<smem>>) -> (i32, i32, i32) {
    %c0_i32 = arith.constant 0 : i32
    %c0_i32_0 = arith.constant 0 : i32
    return %arg0, %c0_i32, %arg1 : i32, i32, i32
  }
  func.func @transform_1(%arg0: i32, %arg1: i32, %arg2: memref<4xi32, #tpu.memory_space<smem>>) -> (i32, i32) {
    %c0_i32 = arith.constant 0 : i32
    %c0_i32_0 = arith.constant 0 : i32
    return %arg1, %c0_i32 : i32, i32
  }
  func.func @transform_2(%arg0: i32, %arg1: i32, %arg2: memref<4xi32, #tpu.memory_space<smem>>) -> (i32, i32, i32) {
    %c0_i32 = arith.constant 0 : i32
    %c0_i32_0 = arith.constant 0 : i32
    %c0_i32_1 = arith.constant 0 : i32
    return %arg0, %c0_i32, %c0_i32_0 : i32, i32, i32
  }
}

</mosaic_0001>

<llo_original>
// kernel: tpu_custom_call.1
$region0: #{tpu_custom_call.1}
  #allocation0 [shape = 'u32[]', space=smem, size = 0x4, offset = 0x4, fixed_abs, tag = 'smem constant byte address 0x4 - core index']
  #allocation1 [shape = 'u32[144,128]{1,0:T(1,128)}', space=vmem, size = 0x12000, scoped, tag = 'internal scratch']
  #allocation2 [shape = 'f32[64,64]{1,0:T(8,128)}', space=vmem, size = 0x8000, scoped, tag = 'scratch operand']
  #allocation3 [shape = 's32[1]{0}', space=sflag, size = 0x4, scoped, tag = 'scoped memory for tpu_custom_call.1']
  #allocation4 [shape = 'u8[512]{0}', space=smem, size = 0x200, scoped, tag = 'prefetched SMEM operand 0']
  %s0 = inlined_call_operand.vmem [shape: s32[4], index: 0, kind: input, shape index: {}]
  %s1 = inlined_call_operand.hbm [shape: bf16[4,64,256], index: 1, kind: input, shape index: {}]
  %s2 = inlined_call_operand.vmem [shape: bf16[256,64], index: 2, kind: input, shape index: {}]
  %s3 = inlined_call_operand.hbm [shape: bf16[4,64,64], index: 3, kind: output, shape index: {}]
  %s4 = sld [smem:[#allocation0]]
  $region57: #{tpu_custom_call.1} parent=0
    _
  %s6 = ssub.s32 1, %s4
  %s7 = scalar_select 0, %s6, %s4
  %s8 = sshll.u32 %s0, 4
  %s9 = int_to_ptr.vmem [resolvable:$true] %s8
  %11 = dma.vmem_to_smem %s9, 16, [#allocation4], [#allocation3]
  %12 = dma.done [#allocation3], 16
  %13 = sfence
  $region1: #{tpu_custom_call.1} parent=0
    #allocation5 [shape = 'u8[32768]{0}', space=vmem, size = 0x8000, scoped, tag = 'input window, operand 1']
    #allocation6 [shape = 's32[2]{0}', space=sflag, size = 0x8, scoped, tag = 'scoped memory for tpu_custom_call.1']
    #allocation7 [shape = 's32[2]{0}', space=sflag, size = 0x8, scoped, tag = 'scoped memory for tpu_custom_call.1']
    #allocation8 [shape = 'u8[32768]{0}', space=vmem, size = 0x8000, scoped, tag = 'output window, operand 0']
    %14 = vsyncpa [#allocation6], 0
    %s15 = scalar_lea.sflag [#allocation6], 1
    %16 = vsyncpa %s15, 0
    %17 = vsyncpa [#allocation7], 0
    %s18 = scalar_lea.sflag [#allocation7], 1
    %19 = vsyncpa %s18, 0
    loop: start=0, step=1, limit=10
    $region2: #{tpu_custom_call.1} parent=1 // loop_pre_header
      _
    $region3: #{tpu_custom_call.1} parent=1 // loop_header
      %s21 = sphi 0, %s25
      %p22 = scmp.ge.s32.totalorder %s21, 10
      %s28 = sphi 0, %s40
      %s29 = sphi 0, %s36
      %s30 = sphi 0, %s28
      %s31 = sphi 0, %s29
      %s32 = sphi 0, %s30
      %s33 = sphi 0, %s31
      %s45 = sphi 0, %s47
      %s48 = sphi 0, %s45
      %s49 = sphi 0, %s48
      %s65 = sphi 0, %s49
      %s71 = sphi 0, %s73
      %s74 = sphi 0, %s71
      %s75 = sphi 0, %s74
      %s91 = sphi 0, %s75
      %s97 = sphi 0, %s99
      %s100 = sphi 0, %s97
      %s101 = sphi 0, %s100
      %s117 = sphi 0, %s101
    $region4: #{tpu_custom_call.1} parent=1 // loop_header_branch
      %24 = sbr.rel (%p22) target = $region8
    $region5: #{tpu_custom_call.1} parent=1 // loop_body
      %s26 = ssub.s32 %s21, 1
      %s27 = ssub.s32 %s21, 2
      %s34 = sadd.s32 1, %s29
      %p35 = scmp.ge.s32.totalorder %s34, 2
      %s36 = scalar_select %p35, 0, %s34
      %s37 = sadd.s32 1, %s28
      %s38 = scalar_select %p35, %s37, %s28
      %p39 = scmp.ge.s32.totalorder %s38, 4
      %s40 = scalar_select %p39, 0, %s38
      %s41 = ssub.s32 %s28, %s40
      %s42 = ssub.s32 %s29, %s36
      %s43 = sor.u32 %s41, %s42
      %p44 = scmp.eq.s32.totalorder %s43, 0
      %s46 = sadd.s32 %s45, 1
      %s47 = scalar_select %p44, %s45, %s46
      %p50 = pneg %p44
      %p51 = scmp.eq.s32.totalorder %s21, 7
      %p52 = por %p50, %p51
      %p53 = scmp.ne.s32.totalorder %s45, %s48
      %p54 = scmp.eq.s32.totalorder %s21, 0
      %p55 = por %p53, %p54
      %p56 = scmp.ne.s32.totalorder %s45, %s48
      %p57 = scmp.eq.s32.totalorder %s26, 7
      %p58 = por %p56, %p57
      %p59 = scmp.ne.s32.totalorder %s48, %s49
      %p60 = scmp.eq.s32.totalorder %s26, 0
      %p61 = por %p59, %p60
      %p62 = scmp.ne.s32.totalorder %s48, %s49
      %p63 = scmp.eq.s32.totalorder %s27, 7
      %p64 = por %p62, %p63
      %p66 = scmp.ne.s32.totalorder %s49, %s65
      %p67 = scmp.eq.s32.totalorder %s27, 0
      %p68 = por %p66, %p67
      %s69 = ssub.s32 %s29, %s36
      %p70 = scmp.eq.s32.totalorder %s69, 0
      %s72 = sadd.s32 %s71, 1
      %s73 = scalar_select %p70, %s71, %s72
      %p76 = pneg %p70
      %p77 = scmp.eq.s32.totalorder %s21, 7
      %p78 = por %p76, %p77
      %p79 = scmp.ne.s32.totalorder %s71, %s74
      %p80 = scmp.eq.s32.totalorder %s21, 0
      %p81 = por %p79, %p80
      %p82 = scmp.ne.s32.totalorder %s71, %s74
      %p83 = scmp.eq.s32.totalorder %s26, 7
      %p84 = por %p82, %p83
      %p85 = scmp.ne.s32.totalorder %s74, %s75
      %p86 = scmp.eq.s32.totalorder %s26, 0
      %p87 = por %p85, %p86
      %p88 = scmp.ne.s32.totalorder %s74, %s75
      %p89 = scmp.eq.s32.totalorder %s27, 7
      %p90 = por %p88, %p89
      %p92 = scmp.ne.s32.totalorder %s75, %s91
      %p93 = scmp.eq.s32.totalorder %s27, 0
      %p94 = por %p92, %p93
      %s95 = ssub.s32 %s28, %s40
      %p96 = scmp.eq.s32.totalorder %s95, 0
      %s98 = sadd.s32 %s97, 1
      %s99 = scalar_select %p96, %s97, %s98
      %p102 = pneg %p96
      %p103 = scmp.eq.s32.totalorder %s21, 7
      %p104 = por %p102, %p103
      %p105 = scmp.ne.s32.totalorder %s97, %s100
      %p106 = scmp.eq.s32.totalorder %s21, 0
      %p107 = por %p105, %p106
      %p108 = scmp.ne.s32.totalorder %s97, %s100
      %p109 = scmp.eq.s32.totalorder %s26, 7
      %p110 = por %p108, %p109
      %p111 = scmp.ne.s32.totalorder %s100, %s101
      %p112 = scmp.eq.s32.totalorder %s26, 0
      %p113 = por %p111, %p112
      %p114 = scmp.ne.s32.totalorder %s100, %s101
      %p115 = scmp.eq.s32.totalorder %s27, 7
      %p116 = por %p114, %p115
      %p118 = scmp.ne.s32.totalorder %s101, %s117
      %p119 = scmp.eq.s32.totalorder %s27, 0
      %p120 = por %p118, %p119
      %p121 = scmp.le.s32.totalorder 1, %s21
      %p122 = scmp.lt.s32.totalorder %s21, 9
      %p123 = pnand %p121, %p122
      %p124 = pneg %p123
      // Predicated region
      $region9: #{tpu_custom_call.1} parent=5 // pred_check
        _
      $region10: #{tpu_custom_call.1} parent=5 // pred_check_branch
        %126 = sbr.rel (%p123) target = $region12
      $region11: #{tpu_custom_call.1} parent=5 // pred_region
        %s127 = ssub.s32 %s21, 1
      $region12: #{tpu_custom_call.1} parent=5 // pred_fallthru
        _
      %p128 = scmp.lt.s32.totalorder %s21, 8
      // Predicated region
      $region13: #{tpu_custom_call.1} parent=5 // pred_check
        %p129 = pneg %p128
      $region14: #{tpu_custom_call.1} parent=5 // pred_check_branch
        %131 = sbr.rel (%p129) target = $region16
      $region15: #{tpu_custom_call.1} parent=5 // pred_region
        // Predicated region
        $region17: #{tpu_custom_call.1} parent=15 // pred_check
          %p132 = pneg %p55
        $region18: #{tpu_custom_call.1} parent=15 // pred_check_branch
          %134 = sbr.rel (%p132) target = $region20
        $region19: #{tpu_custom_call.1} parent=15 // pred_region
          %s135 = sand.u32 %s45, 1
          %s136 = scalar_lea.sflag [#allocation6], %s135
          %s137 = sand.u32 %s45, 1
          %s138 = smul.addr %s137, 32
          %s139 = scalar_lea.vmem [#allocation5], %s138
          %s141 = ssub.s32 512, 512
          %142 = vsyncadd %s136, %s141
          %s143 = smul.addr %s28, 16
          %s144 = sadd.s32 %s29, %s143
          %s145 = smul.addr %s144, 64
          %s146 = scalar_lea.hbm %s1, %s145
          %s147 = sshll.u32 %s139, 4
          %s148 = int_to_ptr.vmem [resolvable:$true] %s147
          %153 = dma.hbm_to_vmem [thread:$0]  %s146, 512, %s148, %s136, 128, 64, 4
        $region20: #{tpu_custom_call.1} parent=15 // pred_fallthru
          _
        // Predicated region
        $region21: #{tpu_custom_call.1} parent=15 // pred_check
          %p154 = pneg %p81
        $region22: #{tpu_custom_call.1} parent=15 // pred_check_branch
          %156 = sbr.rel (%p154) target = $region24
        $region23: #{tpu_custom_call.1} parent=15 // pred_region
          %s157 = smul.u32 16, %s29
          %p158 = scmp.lt.s32.totalorder %s157, 31
          %s159 = scalar_select %p158, %s157, 31
          %s160 = smul.addr %s159, 4
          %s161 = scalar_lea.vmem %s2, %s160
          %s162 = smul.u32 16, %s29
        $region24: #{tpu_custom_call.1} parent=15 // pred_fallthru
          _
      $region16: #{tpu_custom_call.1} parent=5 // pred_fallthru
        _
      %p163 = scmp.le.s32.totalorder 1, %s21
      %p164 = scmp.lt.s32.totalorder %s21, 9
      %p165 = pnand %p163, %p164
      %p166 = pneg %p165
      // Predicated region
      $region25: #{tpu_custom_call.1} parent=5 // pred_check
        _
      $region26: #{tpu_custom_call.1} parent=5 // pred_check_branch
        %168 = sbr.rel (%p165) target = $region28
      $region27: #{tpu_custom_call.1} parent=5 // pred_region
        %s169 = ssub.s32 %s21, 1
        %s170 = sand.u32 %s48, 1
        %s171 = scalar_lea.sflag [#allocation6], %s170
        %s172 = sand.u32 %s48, 1
        %s173 = smul.addr %s172, 32
        %s174 = scalar_lea.vmem [#allocation5], %s173
        // Predicated region
        $region29: #{tpu_custom_call.1} parent=27 // pred_check
          %p175 = pneg %p61
        $region30: #{tpu_custom_call.1} parent=27 // pred_check_branch
          %177 = sbr.rel (%p175) target = $region32
        $region31: #{tpu_custom_call.1} parent=27 // pred_region
          %178 = dma.done %s171, 512
        $region32: #{tpu_custom_call.1} parent=27 // pred_fallthru
          _
        %s179 = sand.u32 %s48, 1
        %s180 = scalar_lea.sflag [#allocation6], %s179
        %s181 = sand.u32 %s48, 1
        %s182 = smul.addr %s181, 32
        %s183 = scalar_lea.vmem [#allocation5], %s182
        %p184 = pneg %p61
        %p185 = pneg %p58
        %s186 = smul.u32 16, %s31
        %p187 = scmp.lt.s32.totalorder %s186, 31
        %s188 = scalar_select %p187, %s186, 31
        %s189 = smul.addr %s188, 4
        %s190 = scalar_lea.vmem %s2, %s189
        %p191 = pneg %p87
        %p192 = pneg %p84
        %p193 = pneg %p113
        %p194 = pneg %p110
        %s195 = sand.u32 %s100, 1
        %s196 = scalar_lea.sflag [#allocation7], %s195
        %s197 = sand.u32 %s100, 1
        %s198 = smul.addr %s197, 32
        %s199 = scalar_lea.vmem [#allocation8], %s198
        %s200 = smul.u32 16, %s31
        %p201 = scmp.lt.s32.totalorder %s200, 31
        %s202 = scalar_select %p201, %s200, 31
        %s203 = smul.addr %s202, 4
        %s204 = scalar_lea.vmem %s2, %s203
        %s205 = smul.u32 16, %s31
        %s207 = sld [smem:[#allocation4 + %s30]]
        %p208 = scmp.eq.s32.totalorder %s31, 0
        // Predicated region
        $region33: #{tpu_custom_call.1} parent=27 // pred_check
          %p209 = pneg %p208
        $region34: #{tpu_custom_call.1} parent=27 // pred_check_branch
          %211 = sbr.rel (%p209) target = $region36
        $region35: #{tpu_custom_call.1} parent=27 // pred_region
          %vm212 = vcmask 523264
          %213 = vst.msk [vmem:[#allocation2] sm:$0xff] %vm212, 0.0
          %214 = vst.msk [vmem:[#allocation2 + $0x8] sm:$0xff] %vm212, 0.0
          %215 = vst.msk [vmem:[#allocation2 + $0x10] sm:$0xff] %vm212, 0.0
          %216 = vst.msk [vmem:[#allocation2 + $0x18] sm:$0xff] %vm212, 0.0
          %217 = vst.msk [vmem:[#allocation2 + $0x20] sm:$0xff] %vm212, 0.0
          %218 = vst.msk [vmem:[#allocation2 + $0x28] sm:$0xff] %vm212, 0.0
          %219 = vst.msk [vmem:[#allocation2 + $0x30] sm:$0xff] %vm212, 0.0
          %220 = vst.msk [vmem:[#allocation2 + $0x38] sm:$0xff] %vm212, 0.0
        $region36: #{tpu_custom_call.1} parent=27 // pred_fallthru
          _
        %p221 = scmp.gt.s32.totalorder %s207, 0
        // Predicated region
        $region37: #{tpu_custom_call.1} parent=27 // pred_check
          %p222 = pneg %p221
        $region38: #{tpu_custom_call.1} parent=27 // pred_check_branch
          %224 = sbr.rel (%p222) target = $region40
        $region39: #{tpu_custom_call.1} parent=27 // pred_region
          %v225 = vld [vmem:[#allocation2] sm:$0xff]
          %v226 = vld [vmem:[#allocation2 + $0x8] sm:$0xff]
          %v227 = vld [vmem:[#allocation2 + $0x10] sm:$0xff]
          %v228 = vld [vmem:[#allocation2 + $0x18] sm:$0xff]
          %v229 = vld [vmem:[#allocation2 + $0x20] sm:$0xff]
          %v230 = vld [vmem:[#allocation2 + $0x28] sm:$0xff]
          %v231 = vld [vmem:[#allocation2 + $0x30] sm:$0xff]
          %v232 = vld [vmem:[#allocation2 + $0x38] sm:$0xff]
          %v233 = vld [vmem:[%s174] sm:$0xf]
          %v234 = vld [vmem:[%s174 + $0x4] sm:$0xf]
          %v235 = vld [vmem:[%s174 + $0x8] sm:$0xf]
          %v236 = vld [vmem:[%s174 + $0xc] sm:$0xf]
          %v237 = vld [vmem:[%s174 + $0x10] sm:$0xf]
          %v238 = vld [vmem:[%s174 + $0x14] sm:$0xf]
          %v239 = vld [vmem:[%s174 + $0x18] sm:$0xf]
          %v240 = vld [vmem:[%s174 + $0x1c] sm:$0xf]
          %v241 = vld [vmem:[%s204] sm:$0xf]
          %v242 = vld [vmem:[%s204 + $0x4] sm:$0xf]
          %v243 = vld [vmem:[%s204 + $0x8] sm:$0xf]
          %v244 = vld [vmem:[%s204 + $0xc] sm:$0xf]
          %v245 = vld [vmem:[%s204 + $0x10] sm:$0xf]
          %v246 = vld [vmem:[%s204 + $0x14] sm:$0xf]
          %v247 = vld [vmem:[%s204 + $0x18] sm:$0xf]
          %v248 = vld [vmem:[%s204 + $0x1c] sm:$0xf]
          %v249 = vld [vmem:[%s204 + $0x20] sm:$0xf]
          %v250 = vld [vmem:[%s204 + $0x24] sm:$0xf]
          %v251 = vld [vmem:[%s204 + $0x28] sm:$0xf]
          %v252 = vld [vmem:[%s204 + $0x2c] sm:$0xf]
          %v253 = vld [vmem:[%s204 + $0x30] sm:$0xf]
          %v254 = vld [vmem:[%s204 + $0x34] sm:$0xf]
          %v255 = vld [vmem:[%s204 + $0x38] sm:$0xf]
          %v256 = vld [vmem:[%s204 + $0x3c] sm:$0xf]
          %v265 = vunpack.c.l.b16 %v233
          %v266 = vunpack.c.l.b16 %v234
          %v267 = vunpack.c.l.b16 %v235
          %v268 = vunpack.c.l.b16 %v236
          %v269 = vunpack.c.l.b16 %v237
          %v270 = vunpack.c.l.b16 %v238
          %v271 = vunpack.c.l.b16 %v239
          %v272 = vunpack.c.l.b16 %v240
          %v273 = vpack.c.b16 %v266, %v265
          %v274 = vpack.c.b16 %v268, %v267
          %v275 = vpack.c.b16 %v270, %v269
          %v276 = vpack.c.b16 %v272, %v271
          %v297 = vunpack.c.l.b16 %v241
          %v298 = vunpack.c.l.b16 %v242
          %v299 = vunpack.c.l.b16 %v243
          %v300 = vunpack.c.l.b16 %v244
          %v301 = vunpack.c.l.b16 %v245
          %v302 = vunpack.c.l.b16 %v246
          %v303 = vunpack.c.l.b16 %v247
          %v304 = vunpack.c.l.b16 %v248
          %v305 = vunpack.c.l.b16 %v249
          %v306 = vunpack.c.l.b16 %v250
          %v307 = vunpack.c.l.b16 %v251
          %v308 = vunpack.c.l.b16 %v252
          %v309 = vunpack.c.l.b16 %v253
          %v310 = vunpack.c.l.b16 %v254
          %v311 = vunpack.c.l.b16 %v255
          %v312 = vunpack.c.l.b16 %v256
          %v313 = vpack.c.b16 %v298, %v297
          %v314 = vpack.c.b16 %v300, %v299
          %v315 = vpack.c.b16 %v302, %v301
          %v316 = vpack.c.b16 %v304, %v303
          %v317 = vpack.c.b16 %v306, %v305
          %v318 = vpack.c.b16 %v308, %v307
          %v319 = vpack.c.b16 %v310, %v309
          %v320 = vpack.c.b16 %v312, %v311
          %329 = vmatprep.subr.bf16.mxu0 0
          %330 = vmatpush1.bf16.msra.mxu0 %v313
          %331 = vmatprep.subr.bf16.mxu0 0
          %332 = vmatpush1.bf16.msra.mxu0 %v314
          %333 = vmatprep.subr.bf16.mxu0 0
          %334 = vmatpush1.bf16.msra.mxu0 %v315
          %335 = vmatprep.subr.bf16.mxu0 0
          %336 = vmatpush1.bf16.msra.mxu0 %v316
          %337 = vmatprep.subr.bf16.mxu0 0
          %338 = vmatpush1.bf16.msra.mxu0 %v317
          %339 = vmatprep.subr.bf16.mxu0 0
          %340 = vmatpush1.bf16.msra.mxu0 %v318
          %341 = vmatprep.subr.bf16.mxu0 0
          %342 = vmatpush1.bf16.msra.mxu0 %v319
          %343 = vmatprep.subr.bf16.mxu0 0
          %344 = vmatpush1.bf16.msra.mxu0 %v320
          %345 = vmatprep.subr.bf16.mxu0 0
          %346 = vmatpush1.bf16.msra.mxu0 0
          %347 = vmatprep.subr.bf16.mxu0 0
          %348 = vmatpush1.bf16.msra.mxu0 0
          %349 = vmatprep.subr.bf16.mxu0 0
          %350 = vmatpush1.bf16.msra.mxu0 0
          %351 = vmatprep.subr.bf16.mxu0 0
          %352 = vmatpush1.bf16.msra.mxu0 0
          %353 = vmatprep.subr.bf16.mxu0 0
          %354 = vmatpush1.bf16.msra.mxu0 0
          %355 = vmatprep.subr.bf16.mxu0 0
          %356 = vmatpush1.bf16.msra.mxu0 0
          %357 = vmatprep.subr.bf16.mxu0 0
          %358 = vmatpush1.bf16.msra.mxu0 0
          %359 = vmatprep.subr.bf16.mxu0 0
          %360 = vmatpush1.bf16.msra.mxu0 0
          %361 = vmatprep.mubr.bf16.mxu0 0
          %362 = vmatmul.mubr.bf16.gmra.mrb[0].mxu0 %v273
          %v363 = vpop.f32.mrb[0].mxu0
          %v364 = vadd.f32 0.0, %v363
          %v365 = vpop.f32.mrb[0].mxu0
          %v366 = vpop.f32.mrb[0].mxu0
          %v367 = vadd.f32 0.0, %v366
          %v368 = vpop.f32.mrb[0].mxu0
          %369 = vmatprep.mubr.bf16.mxu0 0
          %370 = vmatmul.mubr.bf16.gmra.mrb[0].mxu0 %v274
          %v371 = vpop.f32.mrb[0].mxu0
          %v372 = vadd.f32 0.0, %v371
          %v373 = vpop.f32.mrb[0].mxu0
          %v374 = vpop.f32.mrb[0].mxu0
          %v375 = vadd.f32 0.0, %v374
          %v376 = vpop.f32.mrb[0].mxu0
          %377 = vmatprep.mubr.bf16.mxu0 0
          %378 = vmatmul.mubr.bf16.gmra.mrb[0].mxu0 %v275
          %v379 = vpop.f32.mrb[0].mxu0
          %v380 = vadd.f32 0.0, %v379
          %v381 = vpop.f32.mrb[0].mxu0
          %v382 = vpop.f32.mrb[0].mxu0
          %v383 = vadd.f32 0.0, %v382
          %v384 = vpop.f32.mrb[0].mxu0
          %385 = vmatprep.mubr.bf16.mxu0 0
          %386 = vmatmul.mubr.bf16.gmra.mrb[0].mxu0 %v276
          %v387 = vpop.f32.mrb[0].mxu0
          %v388 = vadd.f32 0.0, %v387
          %v389 = vpop.f32.mrb[0].mxu0
          %v390 = vpop.f32.mrb[0].mxu0
          %v391 = vadd.f32 0.0, %v390
          %v392 = vpop.f32.mrb[0].mxu0
          %393 = vdwg.mxu0
          %v394 = vadd.f32 %v225, %v364
          %v395 = vadd.f32 %v226, %v367
          %v396 = vadd.f32 %v227, %v372
          %v397 = vadd.f32 %v228, %v375
          %v398 = vadd.f32 %v229, %v380
          %v399 = vadd.f32 %v230, %v383
          %v400 = vadd.f32 %v231, %v388
          %v401 = vadd.f32 %v232, %v391
          %vm402 = vcmask 523264
          %403 = vst.msk [vmem:[#allocation2] sm:$0xff] %vm402, %v394
          %404 = vst.msk [vmem:[#allocation2 + $0x8] sm:$0xff] %vm402, %v395
          %405 = vst.msk [vmem:[#allocation2 + $0x10] sm:$0xff] %vm402, %v396
          %406 = vst.msk [vmem:[#allocation2 + $0x18] sm:$0xff] %vm402, %v397
          %407 = vst.msk [vmem:[#allocation2 + $0x20] sm:$0xff] %vm402, %v398
          %408 = vst.msk [vmem:[#allocation2 + $0x28] sm:$0xff] %vm402, %v399
          %409 = vst.msk [vmem:[#allocation2 + $0x30] sm:$0xff] %vm402, %v400
          %410 = vst.msk [vmem:[#allocation2 + $0x38] sm:$0xff] %vm402, %v401
        $region40: #{tpu_custom_call.1} parent=27 // pred_fallthru
          _
        %p411 = scmp.eq.s32.totalorder %s31, 1
        // Predicated region
        $region41: #{tpu_custom_call.1} parent=27 // pred_check
          %p412 = pneg %p411
        $region42: #{tpu_custom_call.1} parent=27 // pred_check_branch
          %414 = sbr.rel (%p412) target = $region44
        $region43: #{tpu_custom_call.1} parent=27 // pred_region
          %v415 = vld [vmem:[#allocation2] sm:$0xff]
          %v416 = vld [vmem:[#allocation2 + $0x8] sm:$0xff]
          %v417 = vld [vmem:[#allocation2 + $0x10] sm:$0xff]
          %v418 = vld [vmem:[#allocation2 + $0x18] sm:$0xff]
          %v419 = vld [vmem:[#allocation2 + $0x20] sm:$0xff]
          %v420 = vld [vmem:[#allocation2 + $0x28] sm:$0xff]
          %v421 = vld [vmem:[#allocation2 + $0x30] sm:$0xff]
          %v422 = vld [vmem:[#allocation2 + $0x38] sm:$0xff]
          %v423 = vpack.c.bf16 %v416, %v415
          %v424 = vpack.c.bf16 %v418, %v417
          %v425 = vpack.c.bf16 %v420, %v419
          %v426 = vpack.c.bf16 %v422, %v421
          %v431 = vunpack.c.l.b16 %v423
          %v432 = vunpack.c.h.b16 %v423
          %v433 = vunpack.c.l.b16 %v424
          %v434 = vunpack.c.h.b16 %v424
          %v435 = vunpack.c.l.b16 %v425
          %v436 = vunpack.c.h.b16 %v425
          %v437 = vunpack.c.l.b16 %v426
          %v438 = vunpack.c.h.b16 %v426
          %v439 = vpack.c.b16 %v431, %v431
          %v440 = vpack.c.b16 %v432, %v432
          %v441 = vpack.c.b16 %v433, %v433
          %v442 = vpack.c.b16 %v434, %v434
          %v443 = vpack.c.b16 %v435, %v435
          %v444 = vpack.c.b16 %v436, %v436
          %v445 = vpack.c.b16 %v437, %v437
          %v446 = vpack.c.b16 %v438, %v438
          %vm455 = vcmask 519168
          %456 = vst.msk [vmem:[%s199] sm:$0xf] %vm455, %v439
          %457 = vst.msk [vmem:[%s199 + $0x4] sm:$0xf] %vm455, %v440
          %458 = vst.msk [vmem:[%s199 + $0x8] sm:$0xf] %vm455, %v441
          %459 = vst.msk [vmem:[%s199 + $0xc] sm:$0xf] %vm455, %v442
          %460 = vst.msk [vmem:[%s199 + $0x10] sm:$0xf] %vm455, %v443
          %461 = vst.msk [vmem:[%s199 + $0x14] sm:$0xf] %vm455, %v444
          %462 = vst.msk [vmem:[%s199 + $0x18] sm:$0xf] %vm455, %v445
          %463 = vst.msk [vmem:[%s199 + $0x1c] sm:$0xf] %vm455, %v446
        $region44: #{tpu_custom_call.1} parent=27 // pred_fallthru
          _
        %s464 = sand.u32 %s100, 1
        %s465 = scalar_lea.sflag [#allocation7], %s464
        %s466 = sand.u32 %s100, 1
        %s467 = smul.addr %s466, 32
        %s468 = scalar_lea.vmem [#allocation8], %s467
        // Predicated region
        $region45: #{tpu_custom_call.1} parent=27 // pred_check
          %p469 = pneg %p110
        $region46: #{tpu_custom_call.1} parent=27 // pred_check_branch
          %471 = sbr.rel (%p469) target = $region48
        $region47: #{tpu_custom_call.1} parent=27 // pred_region
          %s473 = ssub.s32 512, 512
          %474 = vsyncadd %s465, %s473
          %s475 = smul.addr %s30, 8
          %s476 = smul.addr %s475, 64
          %s477 = scalar_lea.hbm %s3, %s476
          %s478 = sshll.u32 %s468, 4
          %s479 = int_to_ptr.vmem [resolvable:$true] %s478
          %484 = dma.vmem_to_hbm [thread:$0]  %s479, 512, %s477, %s465, 64, 64, 4
        $region48: #{tpu_custom_call.1} parent=27 // pred_fallthru
          _
      $region28: #{tpu_custom_call.1} parent=5 // pred_fallthru
        _
      %p485 = scmp.le.s32.totalorder 2, %s21
      // Predicated region
      $region49: #{tpu_custom_call.1} parent=5 // pred_check
        %p486 = pneg %p485
      $region50: #{tpu_custom_call.1} parent=5 // pred_check_branch
        %488 = sbr.rel (%p486) target = $region52
      $region51: #{tpu_custom_call.1} parent=5 // pred_region
        %s489 = ssub.s32 %s21, 2
        // Predicated region
        $region53: #{tpu_custom_call.1} parent=51 // pred_check
          %p490 = pneg %p116
        $region54: #{tpu_custom_call.1} parent=51 // pred_check_branch
          %492 = sbr.rel (%p490) target = $region56
        $region55: #{tpu_custom_call.1} parent=51 // pred_region
          %s493 = sand.u32 %s101, 1
          %s494 = scalar_lea.sflag [#allocation7], %s493
          %s495 = sand.u32 %s101, 1
          %s496 = smul.addr %s495, 32
          %s497 = scalar_lea.vmem [#allocation8], %s496
          %498 = dma.done %s494, 512
        $region56: #{tpu_custom_call.1} parent=51 // pred_fallthru
          _
      $region52: #{tpu_custom_call.1} parent=5 // pred_fallthru
        _
    $region6: #{tpu_custom_call.1} parent=1 // loop_footer
      %s25 = sadd.s32 1, %s21
    $region7: #{tpu_custom_call.1} parent=1 // loop_footer_branch
      %20 = sbr.rel target = $region3
    $region8: #{tpu_custom_call.1} parent=1 // loop_exit
      _
    %499 = vsyncpa [#allocation6], 1
    %s500 = scalar_lea.sflag [#allocation6], 1
    %501 = vsyncpa %s500, 1
    %502 = vsyncpa [#allocation7], 1
    %s503 = scalar_lea.sflag [#allocation7], 1
    %504 = vsyncpa %s503, 1

</llo_original>
